<compile_context>
chip_gen: v5e
topology: v5e:2x2
jax: 0.10.0
libtpu: 0.0.40
codegen_flags: <defaults>
</compile_context>

<pallas_src>
import functools

import jax
import jax.numpy as jnp
from jax.experimental import pallas as pl
from jax.experimental.pallas import tpu as pltpu

_EPS = 1e-12


def _round_up(x, m):
    return (x + m - 1) // m * m


def _prototype_kernel(support_ref, labels_ref, center_ref, protos_ref, pnorm2_ref,
                      *, normalize, n_way):
    """One-shot kernel: centered(/normalized) support features -> class prototypes.

    Outputs are padded along the class axis to a lane-dense width (C_pad >= 128).
    """
    s = support_ref[...].astype(jnp.float32) - center_ref[...].astype(jnp.float32)
    if normalize:
        # torch.nn.functional.normalize(x, p=2, dim=1): x / max(||x||_2, eps)
        nrm = jnp.sqrt(jnp.sum(s * s, axis=-1, keepdims=True))
        s = s / jnp.maximum(nrm, _EPS)

    lab = labels_ref[...]                                        # (1, S) int32
    c_pad = protos_ref.shape[0]
    class_ids = jax.lax.broadcasted_iota(jnp.int32, (c_pad, lab.shape[1]), 0)
    sel = (class_ids == lab).astype(jnp.float32)                 # (C_pad, S) selector

    counts = jnp.sum(sel, axis=-1, keepdims=True)                # (C_pad, 1)
    protos = jnp.dot(sel, s, preferred_element_type=jnp.float32)  # (C_pad, D) via MXU
    # max(counts, 1): padded classes have count 0 -> zero prototype (reference would
    # NaN on a truly empty real class; we assume every real class has support).
    protos = protos / jnp.maximum(counts, 1.0)

    protos_ref[...] = protos
    pnorm2_ref[...] = jnp.sum(protos * protos, axis=-1, keepdims=True).T  # (1, C_pad)


def _query_kernel(query_ref, center_ref, protos_ref, pnorm2_ref, out_ref,
                  *, normalize, use_softmax, temperature, n_way, precise):
    """Per-query-tile kernel: centering/normalization, MXU -cdist, masked softmax."""
    q = query_ref[...].astype(jnp.float32) - center_ref[...].astype(jnp.float32)
    if normalize:
        sq = jnp.sum(q * q, axis=-1, keepdims=True)
        if precise:
            q = q / jnp.maximum(jnp.sqrt(sq), _EPS)
        else:
            q = q * jax.lax.rsqrt(jnp.maximum(sq, _EPS * _EPS))   # EUP rsqrt

    qnorm2 = jnp.sum(q * q, axis=-1, keepdims=True)               # (TQ, 1)
    protos = protos_ref[...]                                      # (C_pad, D) f32

    dot_dtype = jnp.float32 if precise else jnp.bfloat16
    # q @ protos^T on the MXU (contract over D, rhs transposed), f32 accumulation.
    gram = jax.lax.dot_general(
        q.astype(dot_dtype), protos.astype(dot_dtype),
        dimension_numbers=(((1,), (1,)), ((), ())),
        preferred_element_type=jnp.float32)                       # (TQ, C_pad)

    dist2 = jnp.maximum(qnorm2 + pnorm2_ref[...] - 2.0 * gram, 0.0)
    logits = -jnp.sqrt(dist2)                                     # (TQ, C_pad)

    if use_softmax:
        # Mask padded class columns so they contribute nothing to the softmax.
        col = jax.lax.broadcasted_iota(jnp.int32, logits.shape, 1)
        z = jnp.where(col < n_way, temperature * logits, -jnp.inf)
        z = z - jnp.max(z, axis=-1, keepdims=True)
        ez = jnp.exp(z)
        denom = jnp.sum(ez, axis=-1, keepdims=True)
        if precise:
            logits = ez / denom
        else:
            logits = ez * pl.reciprocal(denom, approx=True)       # EUP reciprocal

    out_ref[...] = logits.astype(out_ref.dtype)


def _pick_query_tile(Q, D, itemsize):
    """Query tile rows: big enough to amortize per-step overhead, small enough that
    the double-buffered (TQ, D) query tiles stay well under the scoped VMEM default
    (16 MiB on v5e, 32 MiB on v6e/v7x)."""
    budget = 8 * 1024 * 1024                     # ~8 MiB for pipelined query buffers
    tq = max(8, budget // max(1, 2 * D * itemsize))
    tq = min(tq, 512)
    tq = max(8, (tq // 8) * 8)
    tq = min(tq, _round_up(Q, 8))
    return tq


def few_shot_classify(support_features, support_labels, query_features,
                      feature_centering, n_way, *,
                      feature_normalization=None, use_softmax=False,
                      temperature=1.0, precise=False):
    """Wrapper: small glue in JAX, prototype + query-distance hot paths in Pallas."""
    S, D = support_features.shape
    Q, D2 = query_features.shape
    assert D == D2
    if feature_normalization is not None and feature_normalization != 2:
        raise NotImplementedError("only p=2 feature_normalization supported")
    normalize = feature_normalization is not None

    c_pad = max(128, _round_up(n_way, 128))                       # lane-dense classes
    labels2d = jnp.asarray(support_labels, jnp.int32).reshape(1, S)
    center = jnp.broadcast_to(
        jnp.asarray(feature_centering, jnp.float32), (1, D)) \
        if jnp.asarray(feature_centering).ndim <= 1 else \
        jnp.asarray(feature_centering, jnp.float32).reshape(1, D)

    # --- prototypes: one-shot Pallas kernel (hoisted out of the query tiling) ------
    proto_kernel = functools.partial(_prototype_kernel, normalize=normalize,
                                     n_way=n_way)
    protos, pnorm2 = pl.pallas_call(
        proto_kernel,
        out_shape=(jax.ShapeDtypeStruct((c_pad, D), jnp.float32),
                   jax.ShapeDtypeStruct((1, c_pad), jnp.float32)),
        grid=(1,),
        in_specs=[
            pl.BlockSpec((S, D), lambda i: (0, 0)),
            pl.BlockSpec((1, S), lambda i: (0, 0)),
            pl.BlockSpec((1, D), lambda i: (0, 0)),
        ],
        out_specs=(
            pl.BlockSpec((c_pad, D), lambda i: (0, 0)),
            pl.BlockSpec((1, c_pad), lambda i: (0, 0)),
        ),
        compiler_params=pltpu.CompilerParams(dimension_semantics=("arbitrary",)),
    )(support_features, labels2d, center)      # native-dtype DMA (no up-cast)

    # --- query distances: tiled over Q, parallel grid axis (v7x megacore) ----------
    tq = _pick_query_tile(Q, D, jnp.dtype(query_features.dtype).itemsize)
    q_pad = _round_up(Q, tq)
    q_in = query_features
    if q_pad != Q:
        q_in = jnp.pad(q_in, ((0, q_pad - Q), (0, 0)))

    query_kernel = functools.partial(
        _query_kernel, normalize=normalize, use_softmax=use_softmax,
        temperature=float(temperature), n_way=n_way, precise=precise)

    logits = pl.pallas_call(
        query_kernel,
        out_shape=jax.ShapeDtypeStruct((q_pad, c_pad), jnp.float32),
        grid=(q_pad // tq,),
        in_specs=[
            pl.BlockSpec((tq, D), lambda i: (i, 0)),       # query tile (pipelined)
            pl.BlockSpec((1, D), lambda i: (0, 0)),        # centering vector
            pl.BlockSpec((c_pad, D), lambda i: (0, 0)),    # prototypes (resident)
            pl.BlockSpec((1, c_pad), lambda i: (0, 0)),    # ||proto||^2
        ],
        out_specs=pl.BlockSpec((tq, c_pad), lambda i: (i, 0)),
        compiler_params=pltpu.CompilerParams(dimension_semantics=("parallel",)),
    )(q_in, center, protos, pnorm2)             # native-dtype DMA (no up-cast)

    return logits[:Q, :n_way]


def _reference(support_features, support_labels, query_features, feature_centering,
               n_way, *, feature_normalization=None, use_softmax=False,
               temperature=1.0):
    """Pure-JAX reference reproducing the PyTorch semantics."""
    def feats(x):
        x = x - feature_centering
        if feature_normalization is not None:
            n = jnp.sqrt(jnp.sum(x * x, axis=1, keepdims=True))
            x = x / jnp.maximum(n, _EPS)
        return x

    s = feats(support_features)
    q = feats(query_features)
    protos = jnp.stack(
        [jnp.mean(s[support_labels == c], axis=0) for c in range(n_way)], axis=0)
    dist = jnp.sqrt(jnp.sum((q[:, None, :] - protos[None, :, :]) ** 2, axis=-1))
    out = -dist
    if use_softmax:
        out = jax.nn.softmax(temperature * out, axis=-1)
    return out


if __name__ == "__main__":
    key = jax.random.PRNGKey(0)
    k_sup, k_qry, k_center = jax.random.split(key, 3)

    n_way, n_shot, n_query, feat_dim = 4, 2, 8, 128
    n_support = n_way * n_shot

    support_images = jax.random.normal(k_sup, (n_support, feat_dim), jnp.float32)
    query_images = jax.random.normal(k_qry, (n_query, feat_dim), jnp.float32)
    support_labels = jnp.array([0, 1, 2, 3, 0, 1, 2, 3], dtype=jnp.int32)
    # Deterministic "parameter" standing in for feature_centering (default is 0).
    feature_centering = 0.1 * jax.random.normal(k_center, (feat_dim,), jnp.float32)

    cfg = dict(feature_normalization=2, use_softmax=True, temperature=1.0)

    ref = _reference(support_images, support_labels, query_images,
                     feature_centering, n_way, **cfg)

    # f32-dot parity path.
    out_precise = few_shot_classify(support_images, support_labels, query_images,
                                    feature_centering, n_way, precise=True, **cfg)
    out_precise = jax.block_until_ready(out_precise)
    assert out_precise.shape == (n_query, n_way)
    assert jnp.allclose(out_precise, ref, atol=2e-5, rtol=2e-5), (out_precise, ref)

    # Fast path: bf16 MXU inputs (f32 accumulation) + EUP approx reciprocal/rsqrt.
    out_fast = few_shot_classify(support_images, support_labels, query_images,
                                 feature_centering, n_way, precise=False, **cfg)
    out_fast = jax.block_until_ready(out_fast)
    assert out_fast.shape == (n_query, n_way)
    assert jnp.allclose(out_fast, ref, atol=5e-3, rtol=5e-3), (out_fast, ref)

    print("KERNEL_OK")
</pallas_src>

<mosaic_0001>
module attributes {stable_mosaic.version = 11 : i64} {
  func.func @_prototype_kernel(%arg0: i32, %arg1: memref<8x128xf32, #tpu.memory_space<vmem>>, %arg2: memref<1x8xi32, #tpu.memory_space<vmem>>, %arg3: memref<1x128xf32, #tpu.memory_space<vmem>>, %arg4: memref<128x128xf32, #tpu.memory_space<vmem>>, %arg5: memref<1x128xf32, #tpu.memory_space<vmem>>) attributes {dimension_semantics = [#tpu.dimension_semantics<arbitrary>], iteration_bounds = array<i64: 1>, scalar_prefetch = 0 : i64, scratch_operands = 0 : i64, tpu.core_type = #tpu.core_type<tc>, window_params = [{pipeline_mode = #tpu.pipeline_mode<synchronous>, transform_indices = @transform_0, window_bounds = array<i64: 8, 128>}, {pipeline_mode = #tpu.pipeline_mode<synchronous>, transform_indices = @transform_1, window_bounds = array<i64: 1, 8>}, {pipeline_mode = #tpu.pipeline_mode<synchronous>, transform_indices = @transform_2, window_bounds = array<i64: 1, 128>}, {pipeline_mode = #tpu.pipeline_mode<synchronous>, transform_indices = @transform_3, window_bounds = array<i64: 128, 128>}, {pipeline_mode = #tpu.pipeline_mode<synchronous>, transform_indices = @transform_4, window_bounds = array<i64: 1, 128>}]} {
    %c0 = arith.constant 0 : index
    %c0_0 = arith.constant 0 : index
    %0 = vector.load %arg1[%c0, %c0_0] : memref<8x128xf32, #tpu.memory_space<vmem>>, vector<8x128xf32>
    %c0_1 = arith.constant 0 : index
    %c0_2 = arith.constant 0 : index
    %1 = vector.load %arg3[%c0_1, %c0_2] : memref<1x128xf32, #tpu.memory_space<vmem>>, vector<1x128xf32>
    %2 = vector.broadcast %1 : vector<1x128xf32> to vector<8x128xf32>
    %3 = arith.subf %0, %2 : vector<8x128xf32>
    %4 = arith.mulf %3, %3 : vector<8x128xf32>
    %cst = arith.constant dense<0.000000e+00> : vector<8xf32>
    %5 = vector.multi_reduction <add>, %4, %cst [1] : vector<8x128xf32> to vector<8xf32>
    %6 = vector.shape_cast %5 : vector<8xf32> to vector<8x1xf32>
    %7 = math.sqrt %6 : vector<8x1xf32>
    %cst_3 = arith.constant 9.99999996E-13 : f32
    %8 = vector.broadcast %cst_3 : f32 to vector<8x1xf32>
    %9 = arith.maximumf %7, %8 : vector<8x1xf32>
    %10 = vector.broadcast %9 : vector<8x1xf32> to vector<8x128xf32>
    %11 = arith.divf %3, %10 : vector<8x128xf32>
    %c0_4 = arith.constant 0 : index
    %c0_5 = arith.constant 0 : index
    %12 = vector.load %arg2[%c0_4, %c0_5] : memref<1x8xi32, #tpu.memory_space<vmem>>, vector<1x8xi32>
    %13 = tpu.iota {dimensions = array<i32: 0>} : vector<128x8xi32>
    %14 = vector.broadcast %12 : vector<1x8xi32> to vector<128x8xi32>
    %15 = arith.cmpi eq, %13, %14 : vector<128x8xi32>
    %16 = arith.extui %15 : vector<128x8xi1> to vector<128x8xi32>
    %17 = arith.sitofp %16 : vector<128x8xi32> to vector<128x8xf32>
    %cst_6 = arith.constant dense<0.000000e+00> : vector<128xf32>
    %18 = vector.multi_reduction <add>, %17, %cst_6 [1] : vector<128x8xf32> to vector<128xf32>
    %19 = vector.shape_cast %18 : vector<128xf32> to vector<128x1xf32>
    %cst_7 = arith.constant dense<0.000000e+00> : vector<128x128xf32>
    %20 = tpu.matmul %17, %11, %cst_7 {dimension_numbers = #tpu.dot_dimension_numbers<[1], [0], [0], [1], [0, 0, 1, 1], [], []>} : vector<128x8xf32>, vector<8x128xf32>, vector<128x128xf32> -> vector<128x128xf32>
    %cst_8 = arith.constant 1.000000e+00 : f32
    %21 = vector.broadcast %cst_8 : f32 to vector<128x1xf32>
    %22 = arith.maximumf %19, %21 : vector<128x1xf32>
    %23 = vector.broadcast %22 : vector<128x1xf32> to vector<128x128xf32>
    %24 = arith.divf %20, %23 : vector<128x128xf32>
    %c0_9 = arith.constant 0 : index
    %c0_10 = arith.constant 0 : index
    %25 = vector.load %arg4[%c0_9, %c0_10] : memref<128x128xf32, #tpu.memory_space<vmem>>, vector<128x128xf32>
    tpu.vector_store %arg4[%c0_9, %c0_10], %24 {strides = array<i32>} : memref<128x128xf32, #tpu.memory_space<vmem>>, vector<128x128xf32>,
    %26 = arith.mulf %24, %24 : vector<128x128xf32>
    %cst_11 = arith.constant dense<0.000000e+00> : vector<128xf32>
    %27 = vector.multi_reduction <add>, %26, %cst_11 [1] : vector<128x128xf32> to vector<128xf32>
    %28 = vector.shape_cast %27 : vector<128xf32> to vector<128x1xf32>
    %29 = tpu.transpose %28, [1, 0] : vector<128x1xf32> -> vector<1x128xf32>
    %c0_12 = arith.constant 0 : index
    %c0_13 = arith.constant 0 : index
    %30 = vector.load %arg5[%c0_12, %c0_13] : memref<1x128xf32, #tpu.memory_space<vmem>>, vector<1x128xf32>
    tpu.vector_store %arg5[%c0_12, %c0_13], %29 {strides = array<i32>} : memref<1x128xf32, #tpu.memory_space<vmem>>, vector<1x128xf32>,
    return
  }
  func.func @transform_0(%arg0: i32) -> (i32, i32) {
    %c0_i32 = arith.constant 0 : i32
    %c0_i32_0 = arith.constant 0 : i32
    %c0_i32_1 = arith.constant 0 : i32
    return %c0_i32, %c0_i32_0 : i32, i32
  }
  func.func @transform_1(%arg0: i32) -> (i32, i32) {
    %c0_i32 = arith.constant 0 : i32
    %c0_i32_0 = arith.constant 0 : i32
    %c0_i32_1 = arith.constant 0 : i32
    return %c0_i32, %c0_i32_0 : i32, i32
  }
  func.func @transform_2(%arg0: i32) -> (i32, i32) {
    %c0_i32 = arith.constant 0 : i32
    %c0_i32_0 = arith.constant 0 : i32
    %c0_i32_1 = arith.constant 0 : i32
    return %c0_i32, %c0_i32_0 : i32, i32
  }
  func.func @transform_3(%arg0: i32) -> (i32, i32) {
    %c0_i32 = arith.constant 0 : i32
    %c0_i32_0 = arith.constant 0 : i32
    %c0_i32_1 = arith.constant 0 : i32
    return %c0_i32, %c0_i32_0 : i32, i32
  }
  func.func @transform_4(%arg0: i32) -> (i32, i32) {
    %c0_i32 = arith.constant 0 : i32
    %c0_i32_0 = arith.constant 0 : i32
    %c0_i32_1 = arith.constant 0 : i32
    return %c0_i32, %c0_i32_0 : i32, i32
  }
}

</mosaic_0001>

<llo_original>
// kernel: tpu_custom_call.1
$region0: #{tpu_custom_call.1}
  #allocation0 [shape = 'u32[]', space=smem, size = 0x4, offset = 0x4, fixed_abs, tag = 'smem constant byte address 0x4 - core index']
  #allocation1 [shape = 'u32[72,128]{1,0:T(1,128)}', space=vmem, size = 0x9000, scoped, tag = 'internal scratch']
  %s0 = inlined_call_operand.hbm [shape: f32[8,128], index: 0, kind: input, shape index: {}]
  %s1 = inlined_call_operand.hbm [shape: s32[1,8], index: 1, kind: input, shape index: {}]
  %s2 = inlined_call_operand.vmem [shape: f32[1,128], index: 2, kind: input, shape index: {}]
  %s3 = inlined_call_operand.hbm [shape: f32[128,128], index: 3, kind: output, shape index: {0}]
  %s4 = inlined_call_operand.hbm [shape: f32[1,128], index: 4, kind: output, shape index: {1}]
  %5 = xla_tuple %s3, %s4
  %s6 = sld [smem:[#allocation0]]
  $region38: #{tpu_custom_call.1} parent=0
    _
  %s8 = ssub.s32 1, %s6
  %s9 = scalar_select 0, %s8, %s6
  $region1: #{tpu_custom_call.1} parent=0
    #allocation2 [shape = 'u8[4096]{0}', space=vmem, size = 0x1000, scoped, tag = 'input window, operand 0, single buffered']
    #allocation3 [shape = 's32[1]{0}', space=sflag, size = 0x4, scoped, tag = 'scoped memory for tpu_custom_call.1']
    #allocation4 [shape = 's32[1]{0}', space=sflag, size = 0x4, scoped, tag = 'scoped memory for tpu_custom_call.1']
    #allocation5 [shape = 'u8[512]{0}', space=vmem, size = 0x400, scoped, tag = 'input window, operand 1, single buffered']
    #allocation6 [shape = 's32[1]{0}', space=sflag, size = 0x4, scoped, tag = 'scoped memory for tpu_custom_call.1']
    #allocation7 [shape = 'u8[65536]{0}', space=vmem, size = 0x10000, scoped, tag = 'output window, operand 0, single buffered']
    #allocation8 [shape = 'u8[512]{0}', space=vmem, size = 0x400, scoped, tag = 'output window, operand 1, single buffered']
    #allocation9 [shape = 's32[1]{0}', space=sflag, size = 0x4, scoped, tag = 'scoped memory for tpu_custom_call.1']
    %10 = vsyncpa [#allocation3], 0
    %11 = vsyncpa [#allocation6], 0
    %12 = vsyncpa [#allocation4], 0
    %13 = vsyncpa [#allocation9], 0
    // Predicated region
    $region2: #{tpu_custom_call.1} parent=1 // pred_check
      _
    $region3: #{tpu_custom_call.1} parent=1 // pred_check_branch
      %15 = sbr.rel (0) target = $region5
    $region4: #{tpu_custom_call.1} parent=1 // pred_region
      %17 = vsyncadd [#allocation3], 0
      %s19 = sshll.u32 %s0, 4
      %s20 = int_to_ptr.hbm [resolvable:$true] %s19
      %s21 = sshll.u32 [#allocation2], 4
      %s22 = int_to_ptr.vmem [resolvable:$true] %s21
      %24 = dma.hbm_to_vmem [thread:$0]  %s20, 128, %s22, [#allocation3]
    $region5: #{tpu_custom_call.1} parent=1 // pred_fallthru
      _
    // Predicated region
    $region6: #{tpu_custom_call.1} parent=1 // pred_check
      _
    $region7: #{tpu_custom_call.1} parent=1 // pred_check_branch
      %26 = sbr.rel (0) target = $region9
    $region8: #{tpu_custom_call.1} parent=1 // pred_region
      %28 = vsyncadd [#allocation6], 0
      %s30 = sshll.u32 %s1, 4
      %s31 = int_to_ptr.hbm [resolvable:$true] %s30
      %s32 = sshll.u32 [#allocation5], 4
      %s33 = int_to_ptr.vmem [resolvable:$true] %s32
      %35 = dma.hbm_to_vmem [thread:$0]  %s31, 16, %s33, [#allocation6]
    $region9: #{tpu_custom_call.1} parent=1 // pred_fallthru
      _
    // Predicated region
    $region10: #{tpu_custom_call.1} parent=1 // pred_check
      _
    $region11: #{tpu_custom_call.1} parent=1 // pred_check_branch
      %37 = sbr.rel (0) target = $region13
    $region12: #{tpu_custom_call.1} parent=1 // pred_region
      _
    $region13: #{tpu_custom_call.1} parent=1 // pred_fallthru
      _
    // Predicated region
    $region14: #{tpu_custom_call.1} parent=1 // pred_check
      _
    $region15: #{tpu_custom_call.1} parent=1 // pred_check_branch
      %39 = sbr.rel (0) target = $region17
    $region16: #{tpu_custom_call.1} parent=1 // pred_region
      %41 = dma.done [#allocation3], 128
    $region17: #{tpu_custom_call.1} parent=1 // pred_fallthru
      _
    // Predicated region
    $region18: #{tpu_custom_call.1} parent=1 // pred_check
      _
    $region19: #{tpu_custom_call.1} parent=1 // pred_check_branch
      %43 = sbr.rel (0) target = $region21
    $region20: #{tpu_custom_call.1} parent=1 // pred_region
      %45 = dma.done [#allocation6], 16
    $region21: #{tpu_custom_call.1} parent=1 // pred_fallthru
      _
    %v46 = vld [vmem:[#allocation2] sm:$0xff]
    %v47 = vld [vmem:[%s2] sm:$0x1]
    %v49 = vperm.slane %v47, 0
    %v51 = vsub.f32 %v46, %v49
    %v52 = vmul.f32 %v51, %v51
    %53 = vadd.xlane.f32.xlu0 %v52
    %v54 = vpop.xlane.xlu0 %53
    %v55 = vrsqrt.pop %v54
    %v56 = vmul.f32 %v55, %v54
    %v57 = vmul.f32 %v56, %v55
    %v58 = vmul.f32 0.5, %v57
    %v59 = vsub.f32 1.5, %v58
    %v60 = vmul.f32 %v55, %v59
    %v61 = vmul.f32 %v54, %v60
    %vm62 = vcmp.eq.f32.partialorder %v54, inf
    %v63 = vsel %vm62, %v54, %v61
    %vm64 = vcmp.eq.f32.partialorder %v54, 0.0
    %v65 = vand.u32 %v54, 2147483648
    %v66 = vsel %vm64, %v65, %v63
    %v67 = vmax.f32 %v66, 1e-12
    %v68 = vrcp.pop %v67
    %v69 = vmul.f32 %v67, %v68
    %v70 = vsub.f32 1.0, %v69
    %v71 = vmul.f32 %v68, %v70
    %v72 = vadd.f32 %v68, %v71
    %vm73 = vweird.f32 %v67
    %vm74 = vweird.f32 %v68
    %vm75 = vmor %vm73, %vm74
    %v76 = vsel %vm75, %v68, %v72
    %v77 = vand.u32 2147483647, %v67
    %vm78 = vcmp.eq.f32.partialorder %v77, 8.507059e+37
    %v79 = vand.u32 %v67, 2147483648
    %v80 = vor.u32 1.1754944e-38, %v79
    %v81 = vsel %vm78, %v80, %v76
    %v82 = vmul.f32 %v51, %v81
    %v83 = vld [vmem:[#allocation5] sm:$0x1]
    %v84 = vlaneseq
    %v85 = vshrl.u32 %v84, 7
    %v86 = vadd.s32 %v85, 8
    %v87 = vadd.s32 %v85, 16
    %v88 = vadd.s32 %v85, 24
    %v89 = vadd.s32 %v85, 32
    %v90 = vadd.s32 %v85, 40
    %v91 = vadd.s32 %v85, 48
    %v92 = vadd.s32 %v85, 56
    %v93 = vadd.s32 %v85, 64
    %v94 = vadd.s32 %v85, 72
    %v95 = vadd.s32 %v85, 80
    %v96 = vadd.s32 %v85, 88
    %v97 = vadd.s32 %v85, 96
    %v98 = vadd.s32 %v85, 104
    %v99 = vadd.s32 %v85, 112
    %v100 = vadd.s32 %v85, 120
    %v101 = vperm.slane %v83, 0
    %vm102 = vcmp.eq.s32.totalorder %v85, %v101
    %vm103 = vcmp.eq.s32.totalorder %v86, %v101
    %vm104 = vcmp.eq.s32.totalorder %v87, %v101
    %vm105 = vcmp.eq.s32.totalorder %v88, %v101
    %vm106 = vcmp.eq.s32.totalorder %v89, %v101
    %vm107 = vcmp.eq.s32.totalorder %v90, %v101
    %vm108 = vcmp.eq.s32.totalorder %v91, %v101
    %vm109 = vcmp.eq.s32.totalorder %v92, %v101
    %vm110 = vcmp.eq.s32.totalorder %v93, %v101
    %vm111 = vcmp.eq.s32.totalorder %v94, %v101
    %vm112 = vcmp.eq.s32.totalorder %v95, %v101
    %vm113 = vcmp.eq.s32.totalorder %v96, %v101
    %vm114 = vcmp.eq.s32.totalorder %v97, %v101
    %vm115 = vcmp.eq.s32.totalorder %v98, %v101
    %vm116 = vcmp.eq.s32.totalorder %v99, %v101
    %vm117 = vcmp.eq.s32.totalorder %v100, %v101
    %v118 = vsel %vm102, 1, 0
    %v119 = vsel %vm103, 1, 0
    %v120 = vsel %vm104, 1, 0
    %v121 = vsel %vm105, 1, 0
    %v122 = vsel %vm106, 1, 0
    %v123 = vsel %vm107, 1, 0
    %v124 = vsel %vm108, 1, 0
    %v125 = vsel %vm109, 1, 0
    %v126 = vsel %vm110, 1, 0
    %v127 = vsel %vm111, 1, 0
    %v128 = vsel %vm112, 1, 0
    %v129 = vsel %vm113, 1, 0
    %v130 = vsel %vm114, 1, 0
    %v131 = vsel %vm115, 1, 0
    %v132 = vsel %vm116, 1, 0
    %v133 = vsel %vm117, 1, 0
    %v134 = vcvt.s32.f32 %v118
    %v135 = vcvt.s32.f32 %v119
    %v136 = vcvt.s32.f32 %v120
    %v137 = vcvt.s32.f32 %v121
    %v138 = vcvt.s32.f32 %v122
    %v139 = vcvt.s32.f32 %v123
    %v140 = vcvt.s32.f32 %v124
    %v141 = vcvt.s32.f32 %v125
    %v142 = vcvt.s32.f32 %v126
    %v143 = vcvt.s32.f32 %v127
    %v144 = vcvt.s32.f32 %v128
    %v145 = vcvt.s32.f32 %v129
    %v146 = vcvt.s32.f32 %v130
    %v147 = vcvt.s32.f32 %v131
    %v148 = vcvt.s32.f32 %v132
    %v149 = vcvt.s32.f32 %v133
    %vm150 = vcmask 64512
    %v151 = vsel %vm150, %v134, 0.0
    %152 = vadd.xlane.f32.xlu0 %v151
    %v153 = vpop.xlane.xlu0 %152
    %v154 = vsel %vm150, %v135, 0.0
    %155 = vadd.xlane.f32.xlu0 %v154
    %v156 = vpop.xlane.xlu0 %155
    %v157 = vsel %vm150, %v136, 0.0
    %158 = vadd.xlane.f32.xlu0 %v157
    %v159 = vpop.xlane.xlu0 %158
    %v160 = vsel %vm150, %v137, 0.0
    %161 = vadd.xlane.f32.xlu0 %v160
    %v162 = vpop.xlane.xlu0 %161
    %v163 = vsel %vm150, %v138, 0.0
    %164 = vadd.xlane.f32.xlu0 %v163
    %v165 = vpop.xlane.xlu0 %164
    %v166 = vsel %vm150, %v139, 0.0
    %167 = vadd.xlane.f32.xlu0 %v166
    %v168 = vpop.xlane.xlu0 %167
    %v169 = vsel %vm150, %v140, 0.0
    %170 = vadd.xlane.f32.xlu0 %v169
    %v171 = vpop.xlane.xlu0 %170
    %v172 = vsel %vm150, %v141, 0.0
    %173 = vadd.xlane.f32.xlu0 %v172
    %v174 = vpop.xlane.xlu0 %173
    %v175 = vsel %vm150, %v142, 0.0
    %176 = vadd.xlane.f32.xlu0 %v175
    %v177 = vpop.xlane.xlu0 %176
    %v178 = vsel %vm150, %v143, 0.0
    %179 = vadd.xlane.f32.xlu0 %v178
    %v180 = vpop.xlane.xlu0 %179
    %v181 = vsel %vm150, %v144, 0.0
    %182 = vadd.xlane.f32.xlu0 %v181
    %v183 = vpop.xlane.xlu0 %182
    %v184 = vsel %vm150, %v145, 0.0
    %185 = vadd.xlane.f32.xlu0 %v184
    %v186 = vpop.xlane.xlu0 %185
    %v187 = vsel %vm150, %v146, 0.0
    %188 = vadd.xlane.f32.xlu0 %v187
    %v189 = vpop.xlane.xlu0 %188
    %v190 = vsel %vm150, %v147, 0.0
    %191 = vadd.xlane.f32.xlu0 %v190
    %v192 = vpop.xlane.xlu0 %191
    %v193 = vsel %vm150, %v148, 0.0
    %194 = vadd.xlane.f32.xlu0 %v193
    %v195 = vpop.xlane.xlu0 %194
    %v196 = vsel %vm150, %v149, 0.0
    %197 = vadd.xlane.f32.xlu0 %v196
    %v198 = vpop.xlane.xlu0 %197
    %v200 = vsel %vm150, %v134, 0
    %v203 = vsel %vm150, %v135, 0
    %v206 = vsel %vm150, %v136, 0
    %v209 = vsel %vm150, %v137, 0
    %v212 = vsel %vm150, %v138, 0
    %v215 = vsel %vm150, %v139, 0
    %v218 = vsel %vm150, %v140, 0
    %v221 = vsel %vm150, %v141, 0
    %v224 = vsel %vm150, %v142, 0
    %v227 = vsel %vm150, %v143, 0
    %v230 = vsel %vm150, %v144, 0
    %v233 = vsel %vm150, %v145, 0
    %v236 = vsel %vm150, %v146, 0
    %v239 = vsel %vm150, %v147, 0
    %v242 = vsel %vm150, %v148, 0
    %v245 = vsel %vm150, %v149, 0
    %247 = vmatpush.msra.mxu0 0.0
    %248 = vmatpush.msra.mxu0 0.0
    %249 = vmatpush.msra.mxu0 0.0
    %250 = vmatpush.msra.mxu0 0.0
    %251 = vmatpush.msra.mxu0 0.0
    %252 = vmatpush.msra.mxu0 0.0
    %253 = vmatpush.msra.mxu0 0.0
    %254 = vmatpush.msra.mxu0 0.0
    %255 = vmatpush.msra.mxu0 0.0
    %256 = vmatpush.msra.mxu0 0.0
    %257 = vmatpush.msra.mxu0 0.0
    %258 = vmatpush.msra.mxu0 0.0
    %259 = vmatpush.msra.mxu0 0.0
    %260 = vmatpush.msra.mxu0 0.0
    %261 = vmatpush.msra.mxu0 0.0
    %262 = vmatpush.msra.mxu0 %v82
    %263 = vmatmul.f32.gmra.mxu0 %v200
    %v264 = vpop.f32.mrf.mxu0
    %v265 = vadd.f32 0.0, %v264
    %266 = vmatmul.f32.gmra.mxu0 %v203
    %v267 = vpop.f32.mrf.mxu0
    %v268 = vadd.f32 0.0, %v267
    %269 = vmatmul.f32.gmra.mxu0 %v206
    %v270 = vpop.f32.mrf.mxu0
    %v271 = vadd.f32 0.0, %v270
    %272 = vmatmul.f32.gmra.mxu0 %v209
    %v273 = vpop.f32.mrf.mxu0
    %v274 = vadd.f32 0.0, %v273
    %275 = vmatmul.f32.gmra.mxu0 %v212
    %v276 = vpop.f32.mrf.mxu0
    %v277 = vadd.f32 0.0, %v276
    %278 = vmatmul.f32.gmra.mxu0 %v215
    %v279 = vpop.f32.mrf.mxu0
    %v280 = vadd.f32 0.0, %v279
    %281 = vmatmul.f32.gmra.mxu0 %v218
    %v282 = vpop.f32.mrf.mxu0
    %v283 = vadd.f32 0.0, %v282
    %284 = vmatmul.f32.gmra.mxu0 %v221
    %v285 = vpop.f32.mrf.mxu0
    %v286 = vadd.f32 0.0, %v285
    %287 = vmatmul.f32.gmra.mxu0 %v224
    %v288 = vpop.f32.mrf.mxu0
    %v289 = vadd.f32 0.0, %v288
    %290 = vmatmul.f32.gmra.mxu0 %v227
    %v291 = vpop.f32.mrf.mxu0
    %v292 = vadd.f32 0.0, %v291
    %293 = vmatmul.f32.gmra.mxu0 %v230
    %v294 = vpop.f32.mrf.mxu0
    %v295 = vadd.f32 0.0, %v294
    %296 = vmatmul.f32.gmra.mxu0 %v233
    %v297 = vpop.f32.mrf.mxu0
    %v298 = vadd.f32 0.0, %v297
    %299 = vmatmul.f32.gmra.mxu0 %v236
    %v300 = vpop.f32.mrf.mxu0
    %v301 = vadd.f32 0.0, %v300
    %302 = vmatmul.f32.gmra.mxu0 %v239
    %v303 = vpop.f32.mrf.mxu0
    %v304 = vadd.f32 0.0, %v303
    %305 = vmatmul.f32.gmra.mxu0 %v242
    %v306 = vpop.f32.mrf.mxu0
    %v307 = vadd.f32 0.0, %v306
    %308 = vmatmul.f32.gmra.mxu0 %v245
    %v309 = vpop.f32.mrf.mxu0
    %v310 = vadd.f32 0.0, %v309
    %311 = vdwg.mxu0
    %v312 = vmax.f32 %v153, 1.0
    %v313 = vmax.f32 %v156, 1.0
    %v314 = vmax.f32 %v159, 1.0
    %v315 = vmax.f32 %v162, 1.0
    %v316 = vmax.f32 %v165, 1.0
    %v317 = vmax.f32 %v168, 1.0
    %v318 = vmax.f32 %v171, 1.0
    %v319 = vmax.f32 %v174, 1.0
    %v320 = vmax.f32 %v177, 1.0
    %v321 = vmax.f32 %v180, 1.0
    %v322 = vmax.f32 %v183, 1.0
    %v323 = vmax.f32 %v186, 1.0
    %v324 = vmax.f32 %v189, 1.0
    %v325 = vmax.f32 %v192, 1.0
    %v326 = vmax.f32 %v195, 1.0
    %v327 = vmax.f32 %v198, 1.0
    %v328 = vrcp.pop %v312
    %v329 = vmul.f32 %v312, %v328
    %v330 = vsub.f32 1.0, %v329
    %v331 = vmul.f32 %v328, %v330
    %v332 = vadd.f32 %v328, %v331
    %vm333 = vweird.f32 %v312
    %vm334 = vweird.f32 %v328
    %vm335 = vmor %vm333, %vm334
    %v336 = vsel %vm335, %v328, %v332
    %v337 = vand.u32 2147483647, %v312
    %vm338 = vcmp.eq.f32.partialorder %v337, 8.507059e+37
    %v339 = vand.u32 %v312, 2147483648
    %v340 = vor.u32 1.1754944e-38, %v339
    %v341 = vsel %vm338, %v340, %v336
    %v342 = vmul.f32 %v265, %v341
    %v343 = vrcp.pop %v313
    %v344 = vmul.f32 %v313, %v343
    %v345 = vsub.f32 1.0, %v344
    %v346 = vmul.f32 %v343, %v345
    %v347 = vadd.f32 %v343, %v346
    %vm348 = vweird.f32 %v313
    %vm349 = vweird.f32 %v343
    %vm350 = vmor %vm348, %vm349
    %v351 = vsel %vm350, %v343, %v347
    %v352 = vand.u32 2147483647, %v313
    %vm353 = vcmp.eq.f32.partialorder %v352, 8.507059e+37
    %v354 = vand.u32 %v313, 2147483648
    %v355 = vor.u32 1.1754944e-38, %v354
    %v356 = vsel %vm353, %v355, %v351
    %v357 = vmul.f32 %v268, %v356
    %v358 = vrcp.pop %v314
    %v359 = vmul.f32 %v314, %v358
    %v360 = vsub.f32 1.0, %v359
    %v361 = vmul.f32 %v358, %v360
    %v362 = vadd.f32 %v358, %v361
    %vm363 = vweird.f32 %v314
    %vm364 = vweird.f32 %v358
    %vm365 = vmor %vm363, %vm364
    %v366 = vsel %vm365, %v358, %v362
    %v367 = vand.u32 2147483647, %v314
    %vm368 = vcmp.eq.f32.partialorder %v367, 8.507059e+37
    %v369 = vand.u32 %v314, 2147483648
    %v370 = vor.u32 1.1754944e-38, %v369
    %v371 = vsel %vm368, %v370, %v366
    %v372 = vmul.f32 %v271, %v371
    %v373 = vrcp.pop %v315
    %v374 = vmul.f32 %v315, %v373
    %v375 = vsub.f32 1.0, %v374
    %v376 = vmul.f32 %v373, %v375
    %v377 = vadd.f32 %v373, %v376
    %vm378 = vweird.f32 %v315
    %vm379 = vweird.f32 %v373
    %vm380 = vmor %vm378, %vm379
    %v381 = vsel %vm380, %v373, %v377
    %v382 = vand.u32 2147483647, %v315
    %vm383 = vcmp.eq.f32.partialorder %v382, 8.507059e+37
    %v384 = vand.u32 %v315, 2147483648
    %v385 = vor.u32 1.1754944e-38, %v384
    %v386 = vsel %vm383, %v385, %v381
    %v387 = vmul.f32 %v274, %v386
    %v388 = vrcp.pop %v316
    %v389 = vmul.f32 %v316, %v388
    %v390 = vsub.f32 1.0, %v389
    %v391 = vmul.f32 %v388, %v390
    %v392 = vadd.f32 %v388, %v391
    %vm393 = vweird.f32 %v316
    %vm394 = vweird.f32 %v388
    %vm395 = vmor %vm393, %vm394
    %v396 = vsel %vm395, %v388, %v392
    %v397 = vand.u32 2147483647, %v316
    %vm398 = vcmp.eq.f32.partialorder %v397, 8.507059e+37
    %v399 = vand.u32 %v316, 2147483648
    %v400 = vor.u32 1.1754944e-38, %v399
    %v401 = vsel %vm398, %v400, %v396
    %v402 = vmul.f32 %v277, %v401
    %v403 = vrcp.pop %v317
    %v404 = vmul.f32 %v317, %v403
    %v405 = vsub.f32 1.0, %v404
    %v406 = vmul.f32 %v403, %v405
    %v407 = vadd.f32 %v403, %v406
    %vm408 = vweird.f32 %v317
    %vm409 = vweird.f32 %v403
    %vm410 = vmor %vm408, %vm409
    %v411 = vsel %vm410, %v403, %v407
    %v412 = vand.u32 2147483647, %v317
    %vm413 = vcmp.eq.f32.partialorder %v412, 8.507059e+37
    %v414 = vand.u32 %v317, 2147483648
    %v415 = vor.u32 1.1754944e-38, %v414
    %v416 = vsel %vm413, %v415, %v411
    %v417 = vmul.f32 %v280, %v416
    %v418 = vrcp.pop %v318
    %v419 = vmul.f32 %v318, %v418
    %v420 = vsub.f32 1.0, %v419
    %v421 = vmul.f32 %v418, %v420
    %v422 = vadd.f32 %v418, %v421
    %vm423 = vweird.f32 %v318
    %vm424 = vweird.f32 %v418
    %vm425 = vmor %vm423, %vm424
    %v426 = vsel %vm425, %v418, %v422
    %v427 = vand.u32 2147483647, %v318
    %vm428 = vcmp.eq.f32.partialorder %v427, 8.507059e+37
    %v429 = vand.u32 %v318, 2147483648
    %v430 = vor.u32 1.1754944e-38, %v429
    %v431 = vsel %vm428, %v430, %v426
    %v432 = vmul.f32 %v283, %v431
    %v433 = vrcp.pop %v319
    %v434 = vmul.f32 %v319, %v433
    %v435 = vsub.f32 1.0, %v434
    %v436 = vmul.f32 %v433, %v435
    %v437 = vadd.f32 %v433, %v436
    %vm438 = vweird.f32 %v319
    %vm439 = vweird.f32 %v433
    %vm440 = vmor %vm438, %vm439
    %v441 = vsel %vm440, %v433, %v437
    %v442 = vand.u32 2147483647, %v319
    %vm443 = vcmp.eq.f32.partialorder %v442, 8.507059e+37
    %v444 = vand.u32 %v319, 2147483648
    %v445 = vor.u32 1.1754944e-38, %v444
    %v446 = vsel %vm443, %v445, %v441
    %v447 = vmul.f32 %v286, %v446
    %v448 = vrcp.pop %v320
    %v449 = vmul.f32 %v320, %v448
    %v450 = vsub.f32 1.0, %v449
    %v451 = vmul.f32 %v448, %v450
    %v452 = vadd.f32 %v448, %v451
    %vm453 = vweird.f32 %v320
    %vm454 = vweird.f32 %v448
    %vm455 = vmor %vm453, %vm454
    %v456 = vsel %vm455, %v448, %v452
    %v457 = vand.u32 2147483647, %v320
    %vm458 = vcmp.eq.f32.partialorder %v457, 8.507059e+37
    %v459 = vand.u32 %v320, 2147483648
    %v460 = vor.u32 1.1754944e-38, %v459
    %v461 = vsel %vm458, %v460, %v456
    %v462 = vmul.f32 %v289, %v461
    %v463 = vrcp.pop %v321
    %v464 = vmul.f32 %v321, %v463
    %v465 = vsub.f32 1.0, %v464
    %v466 = vmul.f32 %v463, %v465
    %v467 = vadd.f32 %v463, %v466
    %vm468 = vweird.f32 %v321
    %vm469 = vweird.f32 %v463
    %vm470 = vmor %vm468, %vm469
    %v471 = vsel %vm470, %v463, %v467
    %v472 = vand.u32 2147483647, %v321
    %vm473 = vcmp.eq.f32.partialorder %v472, 8.507059e+37
    %v474 = vand.u32 %v321, 2147483648
    %v475 = vor.u32 1.1754944e-38, %v474
    %v476 = vsel %vm473, %v475, %v471
    %v477 = vmul.f32 %v292, %v476
    %v478 = vrcp.pop %v322
    %v479 = vmul.f32 %v322, %v478
    %v480 = vsub.f32 1.0, %v479
    %v481 = vmul.f32 %v478, %v480
    %v482 = vadd.f32 %v478, %v481
    %vm483 = vweird.f32 %v322
    %vm484 = vweird.f32 %v478
    %vm485 = vmor %vm483, %vm484
    %v486 = vsel %vm485, %v478, %v482
    %v487 = vand.u32 2147483647, %v322
    %vm488 = vcmp.eq.f32.partialorder %v487, 8.507059e+37
    %v489 = vand.u32 %v322, 2147483648
    %v490 = vor.u32 1.1754944e-38, %v489
    %v491 = vsel %vm488, %v490, %v486
    %v492 = vmul.f32 %v295, %v491
    %v493 = vrcp.pop %v323
    %v494 = vmul.f32 %v323, %v493
    %v495 = vsub.f32 1.0, %v494
    %v496 = vmul.f32 %v493, %v495
    %v497 = vadd.f32 %v493, %v496
    %vm498 = vweird.f32 %v323
    %vm499 = vweird.f32 %v493
    %vm500 = vmor %vm498, %vm499
    %v501 = vsel %vm500, %v493, %v497
    %v502 = vand.u32 2147483647, %v323
    %vm503 = vcmp.eq.f32.partialorder %v502, 8.507059e+37
    %v504 = vand.u32 %v323, 2147483648
    %v505 = vor.u32 1.1754944e-38, %v504
    %v506 = vsel %vm503, %v505, %v501
    %v507 = vmul.f32 %v298, %v506
    %v508 = vrcp.pop %v324
    %v509 = vmul.f32 %v324, %v508
    %v510 = vsub.f32 1.0, %v509
    %v511 = vmul.f32 %v508, %v510
    %v512 = vadd.f32 %v508, %v511
    %vm513 = vweird.f32 %v324
    %vm514 = vweird.f32 %v508
    %vm515 = vmor %vm513, %vm514
    %v516 = vsel %vm515, %v508, %v512
    %v517 = vand.u32 2147483647, %v324
    %vm518 = vcmp.eq.f32.partialorder %v517, 8.507059e+37
    %v519 = vand.u32 %v324, 2147483648
    %v520 = vor.u32 1.1754944e-38, %v519
    %v521 = vsel %vm518, %v520, %v516
    %v522 = vmul.f32 %v301, %v521
    %v523 = vrcp.pop %v325
    %v524 = vmul.f32 %v325, %v523
    %v525 = vsub.f32 1.0, %v524
    %v526 = vmul.f32 %v523, %v525
    %v527 = vadd.f32 %v523, %v526
    %vm528 = vweird.f32 %v325
    %vm529 = vweird.f32 %v523
    %vm530 = vmor %vm528, %vm529
    %v531 = vsel %vm530, %v523, %v527
    %v532 = vand.u32 2147483647, %v325
    %vm533 = vcmp.eq.f32.partialorder %v532, 8.507059e+37
    %v534 = vand.u32 %v325, 2147483648
    %v535 = vor.u32 1.1754944e-38, %v534
    %v536 = vsel %vm533, %v535, %v531
    %v537 = vmul.f32 %v304, %v536
    %v538 = vrcp.pop %v326
    %v539 = vmul.f32 %v326, %v538
    %v540 = vsub.f32 1.0, %v539
    %v541 = vmul.f32 %v538, %v540
    %v542 = vadd.f32 %v538, %v541
    %vm543 = vweird.f32 %v326
    %vm544 = vweird.f32 %v538
    %vm545 = vmor %vm543, %vm544
    %v546 = vsel %vm545, %v538, %v542
    %v547 = vand.u32 2147483647, %v326
    %vm548 = vcmp.eq.f32.partialorder %v547, 8.507059e+37
    %v549 = vand.u32 %v326, 2147483648
    %v550 = vor.u32 1.1754944e-38, %v549
    %v551 = vsel %vm548, %v550, %v546
    %v552 = vmul.f32 %v307, %v551
    %v553 = vrcp.pop %v327
    %v554 = vmul.f32 %v327, %v553
    %v555 = vsub.f32 1.0, %v554
    %v556 = vmul.f32 %v553, %v555
    %v557 = vadd.f32 %v553, %v556
    %vm558 = vweird.f32 %v327
    %vm559 = vweird.f32 %v553
    %vm560 = vmor %vm558, %vm559
    %v561 = vsel %vm560, %v553, %v557
    %v562 = vand.u32 2147483647, %v327
    %vm563 = vcmp.eq.f32.partialorder %v562, 8.507059e+37
    %v564 = vand.u32 %v327, 2147483648
    %v565 = vor.u32 1.1754944e-38, %v564
    %v566 = vsel %vm563, %v565, %v561
    %v567 = vmul.f32 %v310, %v566
    %568 = vst [vmem:[#allocation7] sm:$0xff] %v342
    %569 = vst [vmem:[#allocation7 + $0x8] sm:$0xff] %v357
    %570 = vst [vmem:[#allocation7 + $0x10] sm:$0xff] %v372
    %571 = vst [vmem:[#allocation7 + $0x18] sm:$0xff] %v387
    %572 = vst [vmem:[#allocation7 + $0x20] sm:$0xff] %v402
    %573 = vst [vmem:[#allocation7 + $0x28] sm:$0xff] %v417
    %574 = vst [vmem:[#allocation7 + $0x30] sm:$0xff] %v432
    %575 = vst [vmem:[#allocation7 + $0x38] sm:$0xff] %v447
    %576 = vst [vmem:[#allocation7 + $0x40] sm:$0xff] %v462
    %577 = vst [vmem:[#allocation7 + $0x48] sm:$0xff] %v477
    %578 = vst [vmem:[#allocation7 + $0x50] sm:$0xff] %v492
    %579 = vst [vmem:[#allocation7 + $0x58] sm:$0xff] %v507
    %580 = vst [vmem:[#allocation7 + $0x60] sm:$0xff] %v522
    %581 = vst [vmem:[#allocation7 + $0x68] sm:$0xff] %v537
    %582 = vst [vmem:[#allocation7 + $0x70] sm:$0xff] %v552
    %583 = vst [vmem:[#allocation7 + $0x78] sm:$0xff] %v567
    %v584 = vmul.f32 %v342, %v342
    %v585 = vmul.f32 %v357, %v357
    %v586 = vmul.f32 %v372, %v372
    %v587 = vmul.f32 %v387, %v387
    %v588 = vmul.f32 %v402, %v402
    %v589 = vmul.f32 %v417, %v417
    %v590 = vmul.f32 %v432, %v432
    %v591 = vmul.f32 %v447, %v447
    %v592 = vmul.f32 %v462, %v462
    %v593 = vmul.f32 %v477, %v477
    %v594 = vmul.f32 %v492, %v492
    %v595 = vmul.f32 %v507, %v507
    %v596 = vmul.f32 %v522, %v522
    %v597 = vmul.f32 %v537, %v537
    %v598 = vmul.f32 %v552, %v552
    %v599 = vmul.f32 %v567, %v567
    %600 = vadd.xlane.f32.xlu0 %v584
    %v601 = vpop.xlane.xlu0 %600
    %602 = vadd.xlane.f32.xlu0 %v585
    %v603 = vpop.xlane.xlu0 %602
    %604 = vadd.xlane.f32.xlu0 %v586
    %v605 = vpop.xlane.xlu0 %604
    %606 = vadd.xlane.f32.xlu0 %v587
    %v607 = vpop.xlane.xlu0 %606
    %608 = vadd.xlane.f32.xlu0 %v588
    %v609 = vpop.xlane.xlu0 %608
    %610 = vadd.xlane.f32.xlu0 %v589
    %v611 = vpop.xlane.xlu0 %610
    %612 = vadd.xlane.f32.xlu0 %v590
    %v613 = vpop.xlane.xlu0 %612
    %614 = vadd.xlane.f32.xlu0 %v591
    %v615 = vpop.xlane.xlu0 %614
    %616 = vadd.xlane.f32.xlu0 %v592
    %v617 = vpop.xlane.xlu0 %616
    %618 = vadd.xlane.f32.xlu0 %v593
    %v619 = vpop.xlane.xlu0 %618
    %620 = vadd.xlane.f32.xlu0 %v594
    %v621 = vpop.xlane.xlu0 %620
    %622 = vadd.xlane.f32.xlu0 %v595
    %v623 = vpop.xlane.xlu0 %622
    %624 = vadd.xlane.f32.xlu0 %v596
    %v625 = vpop.xlane.xlu0 %624
    %626 = vadd.xlane.f32.xlu0 %v597
    %v627 = vpop.xlane.xlu0 %626
    %628 = vadd.xlane.f32.xlu0 %v598
    %v629 = vpop.xlane.xlu0 %628
    %630 = vadd.xlane.f32.xlu0 %v599
    %v631 = vpop.xlane.xlu0 %630
    %632 = vxpose.xlu0.b32.start [1/16] %v601, 128
    %633 = vxpose.xlu0.b32.cont [2/16] %v603, 128
    %634 = vxpose.xlu0.b32.cont [3/16] %v605, 128
    %635 = vxpose.xlu0.b32.cont [4/16] %v607, 128
    %636 = vxpose.xlu0.b32.cont [5/16] %v609, 128
    %637 = vxpose.xlu0.b32.cont [6/16] %v611, 128
    %638 = vxpose.xlu0.b32.cont [7/16] %v613, 128
    %639 = vxpose.xlu0.b32.cont [8/16] %v615, 128
    %640 = vxpose.xlu0.b32.cont [9/16] %v617, 128
    %641 = vxpose.xlu0.b32.cont [10/16] %v619, 128
    %642 = vxpose.xlu0.b32.cont [11/16] %v621, 128
    %643 = vxpose.xlu0.b32.cont [12/16] %v623, 128
    %644 = vxpose.xlu0.b32.cont [13/16] %v625, 128
    %645 = vxpose.xlu0.b32.cont [14/16] %v627, 128
    %646 = vxpose.xlu0.b32.cont [15/16] %v629, 128
    %647 = vxpose.xlu0.b32.end [16/16] %v631, 128
    %v648 = vpop.trf.xlu0
    %v649 = vpop.trf.xlu0
    %v650 = vpop.trf.xlu0
    %v651 = vpop.trf.xlu0
    %v652 = vpop.trf.xlu0
    %v653 = vpop.trf.xlu0
    %v654 = vpop.trf.xlu0
    %v655 = vpop.trf.xlu0
    %v656 = vpop.trf.xlu0
    %v657 = vpop.trf.xlu0
    %v658 = vpop.trf.xlu0
    %v659 = vpop.trf.xlu0
    %v660 = vpop.trf.xlu0
    %v661 = vpop.trf.xlu0
    %v662 = vpop.trf.xlu0
    %v663 = vpop.trf.xlu0
    %664 = vst [vmem:[#allocation8] sm:$0x1] %v648
    // Predicated region
    $region22: #{tpu_custom_call.1} parent=1 // pred_check
      _
    $region23: #{tpu_custom_call.1} parent=1 // pred_check_branch
      %666 = sbr.rel (0) target = $region25
    $region24: #{tpu_custom_call.1} parent=1 // pred_region
      %668 = vsyncadd [#allocation4], 0
      %s669 = sshll.u32 [#allocation7], 4
      %s670 = int_to_ptr.vmem [resolvable:$true] %s669
      %s671 = sshll.u32 %s3, 4
      %s672 = int_to_ptr.hbm [resolvable:$true] %s671
      %677 = dma.vmem_to_hbm [thread:$0]  %s670, 2048, %s672, [#allocation4], 128, 128, 8
    $region25: #{tpu_custom_call.1} parent=1 // pred_fallthru
      _
    // Predicated region
    $region26: #{tpu_custom_call.1} parent=1 // pred_check
      _
    $region27: #{tpu_custom_call.1} parent=1 // pred_check_branch
      %679 = sbr.rel (0) target = $region29
    $region28: #{tpu_custom_call.1} parent=1 // pred_region
      %681 = vsyncadd [#allocation9], 0
      %s683 = sshll.u32 [#allocation8], 4
      %s684 = int_to_ptr.vmem [resolvable:$true] %s683
      %s685 = sshll.u32 %s4, 4
      %s686 = int_to_ptr.hbm [resolvable:$true] %s685
      %688 = dma.vmem_to_hbm [thread:$0]  %s684, 16, %s686, [#allocation9]
    $region29: #{tpu_custom_call.1} parent=1 // pred_fallthru
      _
    // Predicated region
    $region30: #{tpu_custom_call.1} parent=1 // pred_check
      _
    $region31: #{tpu_custom_call.1} parent=1 // pred_check_branch
      %690 = sbr.rel (0) target = $region33
    $region32: #{tpu_custom_call.1} parent=1 // pred_region
      %692 = dma.done [#allocation4], 2048
    $region33: #{tpu_custom_call.1} parent=1 // pred_fallthru
      _
    // Predicated region
    $region34: #{tpu_custom_call.1} parent=1 // pred_check
      _
    $region35: #{tpu_custom_call.1} parent=1 // pred_check_branch
      %694 = sbr.rel (0) target = $region37
    $region36: #{tpu_custom_call.1} parent=1 // pred_region
      %696 = dma.done [#allocation9], 16
    $region37: #{tpu_custom_call.1} parent=1 // pred_fallthru
      _
    %697 = vsyncpa [#allocation3], 1
    %698 = vsyncpa [#allocation6], 1
    %699 = vsyncpa [#allocation4], 1
    %700 = vsyncpa [#allocation9], 1

</llo_original>
